<compile_context>
chip_gen: v7x
topology: tpu7x:2x2x1
jax: 0.10.0
libtpu: 0.0.40
codegen_flags: <defaults>
</compile_context>

<pallas_src>
import functools

import jax
import jax.numpy as jnp
from jax.experimental import pallas as pl
from jax.experimental.pallas import tpu as pltpu

_LANE = 128
_SOFTPLUS_THRESHOLD = 20.0  # PyTorch default (beta=1, threshold=20)


def _round_up(x, m):
    return ((x + m - 1) // m) * m


def _fc_softplus_kernel(x_ref, w_ref, b_ref, o_ref, *, cast_to_bf16):
    x = x_ref[...]
    if cast_to_bf16:
        # Free VPU cast; gives the single-pass bf16 MXU rate without an extra
        # wrapper-side HBM round trip.
        x = x.astype(jnp.bfloat16)
    # Canonical MXU contraction: [TB, D] @ [D, Cp] (weight pre-transposed at
    # prep time -> no in-kernel XLU transpose).
    z = jnp.dot(x, w_ref[...], preferred_element_type=jnp.float32)
    z = z + b_ref[...]  # [TB, Cp] + [1, Cp], fp32 epilogue
    # PyTorch softplus semantics: z if z > 20 else log1p(exp(z)).
    # jnp.minimum guards the untaken branch of jnp.where (both sides evaluate).
    o_ref[...] = jnp.where(
        z > _SOFTPLUS_THRESHOLD,
        z,
        jnp.log1p(jnp.exp(jnp.minimum(z, _SOFTPLUS_THRESHOLD))),
    ).astype(o_ref.dtype)


def prepare_evidence_classifier_params(weight, bias, *, use_bf16_matmul=False):
    """One-time parameter prep (cache the results and reuse every call).

    weight: [C, D] fp32 (PyTorch nn.Linear layout), bias: [C] fp32.
    Returns:
      w_t   [D, Cp]  pre-transposed weight, fp32 or bf16 (Cp = round_up(C, 128))
      b_pad [1, Cp]  fp32 bias, zero-padded
    """
    C, D = weight.shape
    c_pad = _round_up(C, _LANE)
    w_t = jnp.pad(weight, ((0, c_pad - C), (0, 0))).T  # [D, Cp], one-time transpose
    if use_bf16_matmul:
        w_t = w_t.astype(jnp.bfloat16)
    b_pad = jnp.pad(bias, (0, c_pad - C)).reshape(1, c_pad).astype(jnp.float32)
    return jnp.asarray(w_t), b_pad


@functools.partial(
    jax.jit,
    static_argnames=("class_num", "block_b", "out_dtype", "return_padded"),
)
def evidence_classifier_forward(x, w_t, b_pad, *, class_num, block_b=2048,
                                out_dtype=jnp.float32, return_padded=False):
    """x: [B, D] fp32 (or bf16); w_t: [D, Cp]; b_pad: [1, Cp] (from prepare_...)."""
    B, D = x.shape
    Dw, Cp = w_t.shape
    assert Dw == D, "weight/activation feature-dim mismatch"

    use_bf16 = w_t.dtype == jnp.bfloat16
    cast_to_bf16 = use_bf16 and x.dtype != jnp.bfloat16
    row_align = 16 if (use_bf16 or x.dtype == jnp.bfloat16) else 8

    # Batch tiling: single full-extent block for small B; otherwise at least
    # two grid steps (so v7x's 2 TensorCores both get work), capped at block_b
    # rows per step and aligned to the sublane packing of the matmul dtype.
    if B < 64:
        tb = B
    else:
        tb = min(block_b, _round_up(pl.cdiv(B, 2), row_align))
        tb = max(row_align, (tb // row_align) * row_align)
    grid = (pl.cdiv(B, tb),)

    x_bytes = jnp.dtype(x.dtype).itemsize
    w_bytes = jnp.dtype(w_t.dtype).itemsize
    o_bytes = jnp.dtype(out_dtype).itemsize
    cost = pl.CostEstimate(
        flops=2 * B * D * Cp,
        transcendentals=2 * B * Cp,  # exp + log1p per output element
        bytes_accessed=(B * D * x_bytes + D * Cp * w_bytes
                        + Cp * 4 + B * Cp * o_bytes),
    )

    kernel = functools.partial(_fc_softplus_kernel, cast_to_bf16=cast_to_bf16)

    out_pad = pl.pallas_call(
        kernel,
        out_shape=jax.ShapeDtypeStruct((B, Cp), out_dtype),
        grid=grid,
        in_specs=[
            pl.BlockSpec((tb, D), lambda i: (i, 0)),   # x tile, pipelined over B
            pl.BlockSpec((D, Cp), lambda i: (0, 0)),   # weight, resident (constant index)
            pl.BlockSpec((1, Cp), lambda i: (0, 0)),   # bias, resident
        ],
        out_specs=pl.BlockSpec((tb, Cp), lambda i: (i, 0)),  # lane-dense (Cp % 128 == 0)
        compiler_params=pltpu.CompilerParams(
            dimension_semantics=("parallel",),
            vmem_limit_bytes=32 * 1024 * 1024,
        ),
        cost_estimate=cost,
    )(x, w_t, b_pad)

    if return_padded:
        return out_pad          # consumer slices / consumes padded [B, Cp]
    return out_pad[:, :class_num]


def _softplus_ref(z):
    return jnp.where(z > _SOFTPLUS_THRESHOLD, z,
                     jnp.log1p(jnp.exp(jnp.minimum(z, _SOFTPLUS_THRESHOLD))))


if __name__ == "__main__":
    key = jax.random.PRNGKey(0)
    k_x, k_w, k_x2 = jax.random.split(key, 3)

    bottleneck_dim = 256   # module default
    class_num = 16

    # Deterministic init mirroring init_weights for Linear:
    #   xavier_normal_ weight: std = sqrt(2 / (fan_in + fan_out)), zero bias.
    std = (2.0 / (bottleneck_dim + class_num)) ** 0.5
    weight = std * jax.random.normal(k_w, (class_num, bottleneck_dim), jnp.float32)
    bias = jnp.zeros((class_num,), jnp.float32)

    # --- fp32 path, nominal deployment shape (single grid step) ---
    w_t, b_pad = prepare_evidence_classifier_params(weight, bias)
    B = 8
    x = jax.random.normal(k_x, (B, bottleneck_dim), jnp.float32)
    out = jax.block_until_ready(
        evidence_classifier_forward(x, w_t, b_pad, class_num=class_num))
    ref = _softplus_ref(x @ weight.T + bias[None, :])
    assert out.shape == (B, class_num)
    assert jnp.allclose(out, ref, atol=1e-5, rtol=1e-5), "fp32 path mismatch"

    # --- bf16 matmul path, multi-step parallel grid (ragged last tile) ---
    w_t16, b_pad16 = prepare_evidence_classifier_params(
        weight, bias, use_bf16_matmul=True)
    B2 = 72
    x2 = jax.random.normal(k_x2, (B2, bottleneck_dim), jnp.float32)
    out2 = jax.block_until_ready(
        evidence_classifier_forward(x2, w_t16, b_pad16, class_num=class_num))
    ref2 = _softplus_ref(x2 @ weight.T + bias[None, :])
    assert out2.shape == (B2, class_num)
    assert jnp.allclose(out2, ref2, atol=3e-2, rtol=3e-2), "bf16 path mismatch"

    print("KERNEL_OK")
</pallas_src>

<mosaic_0001>
module attributes {stable_mosaic.version = 11 : i64} {
  func.func @_fc_softplus_kernel(%arg0: i32, %arg1: memref<8x256xf32, #tpu.memory_space<vmem>>, %arg2: memref<256x128xf32, #tpu.memory_space<vmem>>, %arg3: memref<1x128xf32, #tpu.memory_space<vmem>>, %arg4: memref<8x128xf32, #tpu.memory_space<vmem>>) attributes {dimension_semantics = [#tpu.dimension_semantics<parallel>], iteration_bounds = array<i64: 1>, scalar_prefetch = 0 : i64, scratch_operands = 0 : i64, tpu.core_type = #tpu.core_type<tc>, window_params = [{transform_indices = @transform_0, window_bounds = array<i64: 8, 256>}, {pipeline_mode = #tpu.pipeline_mode<synchronous>, transform_indices = @transform_1, window_bounds = array<i64: 256, 128>}, {pipeline_mode = #tpu.pipeline_mode<synchronous>, transform_indices = @transform_2, window_bounds = array<i64: 1, 128>}, {transform_indices = @transform_3, window_bounds = array<i64: 8, 128>}]} {
    %c0 = arith.constant 0 : index
    %c0_0 = arith.constant 0 : index
    %0 = vector.load %arg1[%c0, %c0_0] : memref<8x256xf32, #tpu.memory_space<vmem>>, vector<8x256xf32>
    %c0_1 = arith.constant 0 : index
    %c0_2 = arith.constant 0 : index
    %1 = vector.load %arg2[%c0_1, %c0_2] : memref<256x128xf32, #tpu.memory_space<vmem>>, vector<256x128xf32>
    %cst = arith.constant dense<0.000000e+00> : vector<8x128xf32>
    %2 = tpu.matmul %0, %1, %cst {dimension_numbers = #tpu.dot_dimension_numbers<[1], [0], [0], [1], [0, 0, 1, 1], [], []>} : vector<8x256xf32>, vector<256x128xf32>, vector<8x128xf32> -> vector<8x128xf32>
    %c0_3 = arith.constant 0 : index
    %c0_4 = arith.constant 0 : index
    %3 = vector.load %arg3[%c0_3, %c0_4] : memref<1x128xf32, #tpu.memory_space<vmem>>, vector<1x128xf32>
    %4 = vector.broadcast %3 : vector<1x128xf32> to vector<8x128xf32>
    %5 = arith.addf %2, %4 : vector<8x128xf32>
    %cst_5 = arith.constant 2.000000e+01 : f32
    %6 = vector.broadcast %cst_5 : f32 to vector<8x128xf32>
    %7 = arith.cmpf ogt, %5, %6 : vector<8x128xf32>
    %cst_6 = arith.constant 2.000000e+01 : f32
    %8 = vector.broadcast %cst_6 : f32 to vector<8x128xf32>
    %9 = arith.minimumf %5, %8 : vector<8x128xf32>
    %10 = math.exp %9 : vector<8x128xf32>
    %11 = math.log1p %10 : vector<8x128xf32>
    %12 = arith.select %7, %5, %11 : vector<8x128xi1>, vector<8x128xf32>
    %c0_7 = arith.constant 0 : index
    %c0_8 = arith.constant 0 : index
    %13 = vector.load %arg4[%c0_7, %c0_8] : memref<8x128xf32, #tpu.memory_space<vmem>>, vector<8x128xf32>
    tpu.vector_store %arg4[%c0_7, %c0_8], %12 {strides = array<i32>} : memref<8x128xf32, #tpu.memory_space<vmem>>, vector<8x128xf32>,
    return
  }
  func.func @transform_0(%arg0: i32) -> (i32, i32) {
    %c0_i32 = arith.constant 0 : i32
    %c0_i32_0 = arith.constant 0 : i32
    return %arg0, %c0_i32 : i32, i32
  }
  func.func @transform_1(%arg0: i32) -> (i32, i32) {
    %c0_i32 = arith.constant 0 : i32
    %c0_i32_0 = arith.constant 0 : i32
    %c0_i32_1 = arith.constant 0 : i32
    return %c0_i32, %c0_i32_0 : i32, i32
  }
  func.func @transform_2(%arg0: i32) -> (i32, i32) {
    %c0_i32 = arith.constant 0 : i32
    %c0_i32_0 = arith.constant 0 : i32
    %c0_i32_1 = arith.constant 0 : i32
    return %c0_i32, %c0_i32_0 : i32, i32
  }
  func.func @transform_3(%arg0: i32) -> (i32, i32) {
    %c0_i32 = arith.constant 0 : i32
    %c0_i32_0 = arith.constant 0 : i32
    return %arg0, %c0_i32 : i32, i32
  }
}

</mosaic_0001>

<llo_original>
// kernel: evidence_classifier_forward.1
$region0: #{evidence_classifier_forward.1}
  #allocation0 [shape = 'u32[]', space=smem, size = 0x4, offset = 0x4, fixed_abs, tag = 'smem constant byte address 0x4 - core index']
  #allocation1 [shape = 'u32[144,128]{1,0:T(1,128)}', space=vmem, size = 0x12000, scoped, tag = 'internal scratch']
  %s0 = inlined_call_operand.hbm [shape: f32[8,256], index: 0, kind: input, shape index: {}]
  %s1 = inlined_call_operand.hbm [shape: f32[256,128], index: 1, kind: input, shape index: {}]
  %s2 = inlined_call_operand.vmem [shape: f32[1,128], index: 2, kind: input, shape index: {}]
  %s3 = inlined_call_operand.hbm [shape: f32[8,128], index: 3, kind: output, shape index: {}]
  %s4 = sld [smem:[#allocation0]]
  $region30: #{evidence_classifier_forward.1} parent=0
    _
  %s6 = ssub.s32 1, %s4
  %s7 = scalar_select 0, %s6, %s4
  $region1: #{evidence_classifier_forward.1} parent=0
    #allocation2 [shape = 'u8[8192]{0}', space=vmem, size = 0x2000, scoped, tag = 'input window, operand 0, single buffered']
    #allocation3 [shape = 's32[1]{0}', space=sflag, size = 0x4, scoped, tag = 'scoped memory for evidence_classifier_forward.1']
    #allocation4 [shape = 's32[1]{0}', space=sflag, size = 0x4, scoped, tag = 'scoped memory for evidence_classifier_forward.1']
    #allocation5 [shape = 'u8[131072]{0}', space=vmem, size = 0x20000, scoped, tag = 'input window, operand 1, single buffered']
    #allocation6 [shape = 's32[1]{0}', space=sflag, size = 0x4, scoped, tag = 'scoped memory for evidence_classifier_forward.1']
    #allocation7 [shape = 'u8[4096]{0}', space=vmem, size = 0x1000, scoped, tag = 'output window, operand 0, single buffered']
    %8 = vsyncpa [#allocation3], 0
    %9 = vsyncpa [#allocation6], 0
    %10 = vsyncpa [#allocation4], 0
    // Predicated region
    $region2: #{evidence_classifier_forward.1} parent=1 // pred_check
      _
    $region3: #{evidence_classifier_forward.1} parent=1 // pred_check_branch
      %12 = sbr.rel (0) target = $region5
    $region4: #{evidence_classifier_forward.1} parent=1 // pred_region
      %s14 = ssub.s32 256, 256
      %15 = vsyncadd [#allocation3], %s14
      %s17 = sshll.u32 [#allocation2], 4
      %s18 = int_to_ptr.vmem [resolvable:$true] %s17
      %20 = dma.hbm_to_vmem [thread:$0]  %s0, 256, %s18, [#allocation3]
    $region5: #{evidence_classifier_forward.1} parent=1 // pred_fallthru
      _
    // Predicated region
    $region6: #{evidence_classifier_forward.1} parent=1 // pred_check
      _
    $region7: #{evidence_classifier_forward.1} parent=1 // pred_check_branch
      %22 = sbr.rel (0) target = $region9
    $region8: #{evidence_classifier_forward.1} parent=1 // pred_region
      %s24 = ssub.s32 4096, 4096
      %25 = vsyncadd [#allocation6], %s24
      %s26 = sshll.u32 [#allocation5], 4
      %s27 = int_to_ptr.vmem [resolvable:$true] %s26
      %32 = dma.hbm_to_vmem [thread:$0]  %s1, 4096, %s27, [#allocation6], 128, 128, 8
    $region9: #{evidence_classifier_forward.1} parent=1 // pred_fallthru
      _
    // Predicated region
    $region10: #{evidence_classifier_forward.1} parent=1 // pred_check
      _
    $region11: #{evidence_classifier_forward.1} parent=1 // pred_check_branch
      %34 = sbr.rel (0) target = $region13
    $region12: #{evidence_classifier_forward.1} parent=1 // pred_region
      _
    $region13: #{evidence_classifier_forward.1} parent=1 // pred_fallthru
      _
    // Predicated region
    $region14: #{evidence_classifier_forward.1} parent=1 // pred_check
      _
    $region15: #{evidence_classifier_forward.1} parent=1 // pred_check_branch
      %36 = sbr.rel (0) target = $region17
    $region16: #{evidence_classifier_forward.1} parent=1 // pred_region
      %37 = dma.done [#allocation3], 256
    $region17: #{evidence_classifier_forward.1} parent=1 // pred_fallthru
      _
    // Predicated region
    $region18: #{evidence_classifier_forward.1} parent=1 // pred_check
      _
    $region19: #{evidence_classifier_forward.1} parent=1 // pred_check_branch
      %39 = sbr.rel (0) target = $region21
    $region20: #{evidence_classifier_forward.1} parent=1 // pred_region
      %40 = dma.done [#allocation6], 4096
    $region21: #{evidence_classifier_forward.1} parent=1 // pred_fallthru
      _
    %v41 = vld [vmem:[#allocation2] sm:$0xff]
    %v42 = vld [vmem:[#allocation2 + $0x8] sm:$0xff]
    %v43 = vld [vmem:[#allocation5] sm:$0xff]
    %v44 = vld [vmem:[#allocation5 + $0x8] sm:$0xff]
    %v45 = vld [vmem:[#allocation5 + $0x10] sm:$0xff]
    %v46 = vld [vmem:[#allocation5 + $0x18] sm:$0xff]
    %v47 = vld [vmem:[#allocation5 + $0x20] sm:$0xff]
    %v48 = vld [vmem:[#allocation5 + $0x28] sm:$0xff]
    %v49 = vld [vmem:[#allocation5 + $0x30] sm:$0xff]
    %v50 = vld [vmem:[#allocation5 + $0x38] sm:$0xff]
    %v51 = vld [vmem:[#allocation5 + $0x40] sm:$0xff]
    %v52 = vld [vmem:[#allocation5 + $0x48] sm:$0xff]
    %v53 = vld [vmem:[#allocation5 + $0x50] sm:$0xff]
    %v54 = vld [vmem:[#allocation5 + $0x58] sm:$0xff]
    %v55 = vld [vmem:[#allocation5 + $0x60] sm:$0xff]
    %v56 = vld [vmem:[#allocation5 + $0x68] sm:$0xff]
    %v57 = vld [vmem:[#allocation5 + $0x70] sm:$0xff]
    %v58 = vld [vmem:[#allocation5 + $0x78] sm:$0xff]
    %v59 = vld [vmem:[#allocation5 + $0x80] sm:$0xff]
    %v60 = vld [vmem:[#allocation5 + $0x88] sm:$0xff]
    %v61 = vld [vmem:[#allocation5 + $0x90] sm:$0xff]
    %v62 = vld [vmem:[#allocation5 + $0x98] sm:$0xff]
    %v63 = vld [vmem:[#allocation5 + $0xa0] sm:$0xff]
    %v64 = vld [vmem:[#allocation5 + $0xa8] sm:$0xff]
    %v65 = vld [vmem:[#allocation5 + $0xb0] sm:$0xff]
    %v66 = vld [vmem:[#allocation5 + $0xb8] sm:$0xff]
    %v67 = vld [vmem:[#allocation5 + $0xc0] sm:$0xff]
    %v68 = vld [vmem:[#allocation5 + $0xc8] sm:$0xff]
    %v69 = vld [vmem:[#allocation5 + $0xd0] sm:$0xff]
    %v70 = vld [vmem:[#allocation5 + $0xd8] sm:$0xff]
    %v71 = vld [vmem:[#allocation5 + $0xe0] sm:$0xff]
    %v72 = vld [vmem:[#allocation5 + $0xe8] sm:$0xff]
    %v73 = vld [vmem:[#allocation5 + $0xf0] sm:$0xff]
    %v74 = vld [vmem:[#allocation5 + $0xf8] sm:$0xff]
    %v75 = vld [vmem:[%s2] sm:$0x1]
    %v77 = vlaneseq
    %v78 = vshrl.u32 %v77, 7
    %v79 = vsub.s32 0, %v78
    %v80 = vrot.slane %v75, %v79
    %82 = vmatprep.subr.mxu0 0.0
    %83 = vmatpush1.msra.mxu0 %v43
    %84 = vmatprep.subr.mxu0 0.0
    %85 = vmatpush1.msra.mxu0 %v44
    %86 = vmatprep.subr.mxu0 0.0
    %87 = vmatpush1.msra.mxu0 %v45
    %88 = vmatprep.subr.mxu0 0.0
    %89 = vmatpush1.msra.mxu0 %v46
    %90 = vmatprep.subr.mxu0 0.0
    %91 = vmatpush1.msra.mxu0 %v47
    %92 = vmatprep.subr.mxu0 0.0
    %93 = vmatpush1.msra.mxu0 %v48
    %94 = vmatprep.subr.mxu0 0.0
    %95 = vmatpush1.msra.mxu0 %v49
    %96 = vmatprep.subr.mxu0 0.0
    %97 = vmatpush1.msra.mxu0 %v50
    %98 = vmatprep.subr.mxu0 0.0
    %99 = vmatpush1.msra.mxu0 %v51
    %100 = vmatprep.subr.mxu0 0.0
    %101 = vmatpush1.msra.mxu0 %v52
    %102 = vmatprep.subr.mxu0 0.0
    %103 = vmatpush1.msra.mxu0 %v53
    %104 = vmatprep.subr.mxu0 0.0
    %105 = vmatpush1.msra.mxu0 %v54
    %106 = vmatprep.subr.mxu0 0.0
    %107 = vmatpush1.msra.mxu0 %v55
    %108 = vmatprep.subr.mxu0 0.0
    %109 = vmatpush1.msra.mxu0 %v56
    %110 = vmatprep.subr.mxu0 0.0
    %111 = vmatpush1.msra.mxu0 %v57
    %112 = vmatprep.subr.mxu0 0.0
    %113 = vmatpush1.msra.mxu0 %v58
    %114 = vmatprep.subr.mxu0 0.0
    %115 = vmatpush1.msra.mxu0 %v59
    %116 = vmatprep.subr.mxu0 0.0
    %117 = vmatpush1.msra.mxu0 %v60
    %118 = vmatprep.subr.mxu0 0.0
    %119 = vmatpush1.msra.mxu0 %v61
    %120 = vmatprep.subr.mxu0 0.0
    %121 = vmatpush1.msra.mxu0 %v62
    %122 = vmatprep.subr.mxu0 0.0
    %123 = vmatpush1.msra.mxu0 %v63
    %124 = vmatprep.subr.mxu0 0.0
    %125 = vmatpush1.msra.mxu0 %v64
    %126 = vmatprep.subr.mxu0 0.0
    %127 = vmatpush1.msra.mxu0 %v65
    %128 = vmatprep.subr.mxu0 0.0
    %129 = vmatpush1.msra.mxu0 %v66
    %130 = vmatprep.subr.mxu0 0.0
    %131 = vmatpush1.msra.mxu0 %v67
    %132 = vmatprep.subr.mxu0 0.0
    %133 = vmatpush1.msra.mxu0 %v68
    %134 = vmatprep.subr.mxu0 0.0
    %135 = vmatpush1.msra.mxu0 %v69
    %136 = vmatprep.subr.mxu0 0.0
    %137 = vmatpush1.msra.mxu0 %v70
    %138 = vmatprep.subr.mxu0 0.0
    %139 = vmatpush1.msra.mxu0 %v71
    %140 = vmatprep.subr.mxu0 0.0
    %141 = vmatpush1.msra.mxu0 %v72
    %142 = vmatprep.subr.mxu0 0.0
    %143 = vmatpush1.msra.mxu0 %v73
    %144 = vmatprep.subr.mxu0 0.0
    %145 = vmatpush1.msra.mxu0 %v74
    %146 = vmatprep.mubr.f32.mxu0 %v42
    %147 = vmatmul.mubr.f32.gmra.mrb[0].mxu0 %v41
    %v148 = vpop.f32.mrb[0].mxu0
    %v149 = vadd.f32 %v80, %v148
    %v150 = vpop.f32.mrb[0].mxu0
    %151 = vdwg.mxu0
    %vm152 = vcmp.gt.f32.partialorder %v149, 20.0
    %v153 = vmin.f32 %v149, 20.0
    %v154 = vmul.f32 %v153, 1.442695
    %v155 = vpow.pop %v154
    %v156 = vadd.f32 %v155, 1.0
    %v157 = vlog2.pop %v156
    %v158 = vmul.f32 %v157, 0.6931472
    %v159 = vmul.f32 -0.5, %v155
    %v160 = vadd.f32 %v159, 1.0
    %v161 = vmul.f32 %v160, %v155
    %v162 = vand.u32 2147483647, %v155
    %vm163 = vcmp.lt.f32.partialorder %v162, 0.0004427343
    %v164 = vsel %vm163, %v161, %v158
    %v165 = vsel %vm152, %v149, %v164
    %166 = vst [vmem:[#allocation7] sm:$0xff] %v165
    // Predicated region
    $region22: #{evidence_classifier_forward.1} parent=1 // pred_check
      _
    $region23: #{evidence_classifier_forward.1} parent=1 // pred_check_branch
      %168 = sbr.rel (0) target = $region25
    $region24: #{evidence_classifier_forward.1} parent=1 // pred_region
      %s170 = ssub.s32 128, 128
      %171 = vsyncadd [#allocation4], %s170
      %s173 = sshll.u32 [#allocation7], 4
      %s174 = int_to_ptr.vmem [resolvable:$true] %s173
      %176 = dma.vmem_to_hbm [thread:$0]  %s174, 128, %s3, [#allocation4]
    $region25: #{evidence_classifier_forward.1} parent=1 // pred_fallthru
      _
    // Predicated region
    $region26: #{evidence_classifier_forward.1} parent=1 // pred_check
      _
    $region27: #{evidence_classifier_forward.1} parent=1 // pred_check_branch
      %178 = sbr.rel (0) target = $region29
    $region28: #{evidence_classifier_forward.1} parent=1 // pred_region
      %179 = dma.done [#allocation4], 128
    $region29: #{evidence_classifier_forward.1} parent=1 // pred_fallthru
      _
    %180 = vsyncpa [#allocation3], 1
    %181 = vsyncpa [#allocation6], 1
    %182 = vsyncpa [#allocation4], 1

</llo_original>
